<compile_context>
chip_gen: v7x
topology: tpu7x:2x2x1
jax: 0.10.0
libtpu: 0.0.40
codegen_flags: <defaults>
</compile_context>

<pallas_src>
import functools

import jax
import jax.numpy as jnp
from jax import lax
from jax.experimental import pallas as pl
from jax.experimental.pallas import tpu as pltpu


def _resnet_block_kernel(xp_ref, w1_ref, w2_ref, wd_ref, b1_ref, b2_ref,
                         o_ref, h1_ref, *, H):
    """Per-batch block; all refs in VMEM.

    xp_ref : (H+4, W*Cin)  bf16  rows 2..H+1 hold x[b, h] with lane = w*Cin+ci,
                                 rows 0,1,H+2,H+3 are zero (h padding + halo)
    w1_ref : (3, W*Cin,  W*Cmid) bf16  banded conv1 taps (BN1 scale folded)
    w2_ref : (3, W*Cmid, W*Cout) bf16  banded conv2 taps (BN2 scale folded)
    wd_ref : (W*Cin, W*Cout)     bf16  block-diag 1x1 shortcut (BNd scale folded)
    b1_ref : (1, W*Cmid) f32     BN1 shift, tiled over w
    b2_ref : (1, W*Cout) f32     BN2 shift + shortcut-BN shift, tiled over w
    o_ref  : (H, W*Cout) f32     lane-dense output rows
    h1_ref : (H+2, W*Cmid) bf16  scratch: h1 in h-padded row layout
    """
    P = H + 2

    # ---- conv1 (3x3, pad=1) + BN1 + ReLU : 3 banded matmuls over kh taps ----
    acc1 = jnp.zeros((P, w1_ref.shape[2]), jnp.float32)
    for t in range(3):
        acc1 = acc1 + jnp.dot(xp_ref[t:t + P, :], w1_ref[t],
                              preferred_element_type=jnp.float32)
    h1 = jnp.maximum(acc1 + b1_ref[...], 0.0)
    # rows 0 and H+1 are h-padding positions: force to zero so conv2 sees
    # correct zero padding.
    rid = lax.broadcasted_iota(jnp.int32, (P, 1), 0)
    h1 = jnp.where(jnp.logical_and(rid >= 1, rid <= H), h1, 0.0)
    h1_ref[...] = h1.astype(h1_ref.dtype)

    # ---- conv2 (3x3, pad=1) + BN2  +  1x1 projection shortcut + BNd --------
    acc2 = jnp.dot(xp_ref[2:2 + H, :], wd_ref[...],
                   preferred_element_type=jnp.float32)        # shortcut path
    for t in range(3):
        acc2 = acc2 + jnp.dot(h1_ref[t:t + H, :], w2_ref[t],
                              preferred_element_type=jnp.float32)

    # residual add already inside acc2; bias + ReLU fused into one store.
    o_ref[...] = jnp.maximum(acc2 + b2_ref[...], 0.0).astype(o_ref.dtype)


def _fold_bn(gamma, beta, mean, var, eps=1e-5):
    scale = gamma * lax.rsqrt(var + eps)
    shift = beta - mean * scale
    return scale, shift


def _banded_3x3(w_oihw, scale, W):
    """(Cout,Cin,3,3) torch weight -> (3, W*Cin, W*Cout) banded tap matrices.

    band[kh][w_in*Cin+ci, w_out*Cout+co] = scale[co] * w[co,ci,kh,w_in-w_out+1]
    for |w_in - w_out| <= 1, else 0 (encodes the dw taps and w zero-padding).
    """
    wf = w_oihw * scale[:, None, None, None]
    taps = jnp.transpose(wf, (2, 3, 1, 0)).astype(jnp.float32)  # (kh,kw,Cin,Cout)
    bands = []
    for kh in range(3):
        m = 0.0
        for kw in range(3):
            d = kw - 1                                          # w_in - w_out
            m = m + jnp.kron(jnp.eye(W, k=-d, dtype=jnp.float32), taps[kh, kw])
        bands.append(m)
    return jnp.stack(bands)


@jax.jit
def resnet_block_forward(x_nchw, params):
    """x_nchw: (B, Cin, H, W) f32 -> (B, Cout, H, W) f32."""
    B, Cin, H, W = x_nchw.shape
    Cmid = params["w1"].shape[0]
    Cout = params["w2"].shape[0]

    s1, b1 = _fold_bn(*params["bn1"])
    s2, b2 = _fold_bn(*params["bn2"])
    sd, bd = _fold_bn(*params["bnd"])

    # BN scales folded into the conv weights; banded block-Toeplitz form.
    w1b = _banded_3x3(params["w1"], s1, W).astype(jnp.bfloat16)  # (3, W*Cin, W*Cmid)
    w2b = _banded_3x3(params["w2"], s2, W).astype(jnp.bfloat16)  # (3, W*Cmid, W*Cout)
    wd_f = (params["wd"][:, :, 0, 0] * sd[:, None]).T            # (Cin, Cout)
    wdb = jnp.kron(jnp.eye(W, dtype=jnp.float32), wd_f).astype(jnp.bfloat16)

    bias1 = jnp.tile(b1, W).reshape(1, W * Cmid).astype(jnp.float32)
    bias2 = jnp.tile(b2 + bd, W).reshape(1, W * Cout).astype(jnp.float32)

    # lane-dense activation layout: (B, rows, W*Cin); rows h-padded by 2 on
    # each side (1 for the conv halo, +1 so all three kh slices stay in-range).
    x_rows = jnp.transpose(x_nchw, (0, 2, 3, 1)).reshape(B, H, W * Cin)
    xp = jnp.pad(x_rows, ((0, 0), (2, 2), (0, 0))).astype(jnp.bfloat16)

    P = H + 2
    WCin, WCmid, WCout = W * Cin, W * Cmid, W * Cout

    out_rows = pl.pallas_call(
        functools.partial(_resnet_block_kernel, H=H),
        out_shape=jax.ShapeDtypeStruct((B, H, WCout), jnp.float32),
        grid=(B,),
        in_specs=[
            pl.BlockSpec((None, P + 2, WCin), lambda b: (b, 0, 0)),
            pl.BlockSpec((3, WCin, WCmid), lambda b: (0, 0, 0)),
            pl.BlockSpec((3, WCmid, WCout), lambda b: (0, 0, 0)),
            pl.BlockSpec((WCin, WCout), lambda b: (0, 0)),
            pl.BlockSpec((1, WCmid), lambda b: (0, 0)),
            pl.BlockSpec((1, WCout), lambda b: (0, 0)),
        ],
        out_specs=pl.BlockSpec((None, H, WCout), lambda b: (b, 0, 0)),
        scratch_shapes=[pltpu.VMEM((P, WCmid), jnp.bfloat16)],
        compiler_params=pltpu.CompilerParams(
            dimension_semantics=("parallel",)),   # megacore split over batch (v7x)
    )(xp, w1b, w2b, wdb, bias1, bias2)

    # (B, H, W*Cout) -> (B, H, W, Cout) -> NCHW
    return jnp.transpose(out_rows.reshape(B, H, W, Cout), (0, 3, 1, 2))


# ----------------------- pure-JAX reference (NCHW) -----------------------
def _conv_nchw(x, w, stride=1, pad=1):
    return lax.conv_general_dilated(
        x, w, (stride, stride), [(pad, pad), (pad, pad)],
        dimension_numbers=("NCHW", "OIHW", "NCHW"),
        precision=lax.Precision.HIGHEST)


def _bn_nchw(x, gamma, beta, mean, var, eps=1e-5):
    g = gamma[None, :, None, None]
    b = beta[None, :, None, None]
    m = mean[None, :, None, None]
    v = var[None, :, None, None]
    return (x - m) / jnp.sqrt(v + eps) * g + b


def reference_forward(x, params):
    h = _conv_nchw(x, params["w1"])
    h = jax.nn.relu(_bn_nchw(h, *params["bn1"]))
    h = _conv_nchw(h, params["w2"])
    h = _bn_nchw(h, *params["bn2"])
    ident = _conv_nchw(x, params["wd"], pad=0)
    ident = _bn_nchw(ident, *params["bnd"])
    return jax.nn.relu(h + ident)


if __name__ == "__main__":
    B, Cin, Cmid, Cout, H, W = 2, 4, 4, 8, 16, 16

    key = jax.random.PRNGKey(0)
    keys = jax.random.split(key, 12)

    def bn_params(k, c):
        k1, k2, k3, k4 = jax.random.split(k, 4)
        gamma = 1.0 + 0.1 * jax.random.normal(k1, (c,), jnp.float32)
        beta = 0.1 * jax.random.normal(k2, (c,), jnp.float32)
        mean = 0.1 * jax.random.normal(k3, (c,), jnp.float32)
        var = 0.5 + jnp.abs(jax.random.normal(k4, (c,), jnp.float32))
        return (gamma, beta, mean, var)

    params = {
        "w1": 0.1 * jax.random.normal(keys[0], (Cmid, Cin, 3, 3), jnp.float32),
        "w2": 0.1 * jax.random.normal(keys[1], (Cout, Cmid, 3, 3), jnp.float32),
        "wd": 0.1 * jax.random.normal(keys[2], (Cout, Cin, 1, 1), jnp.float32),
        "bn1": bn_params(keys[3], Cmid),
        "bn2": bn_params(keys[4], Cout),
        "bnd": bn_params(keys[5], Cout),
    }

    x = jax.random.normal(keys[6], (B, Cin, H, W), jnp.float32)

    out = jax.block_until_ready(resnet_block_forward(x, params))
    ref = jax.block_until_ready(reference_forward(x, params))

    assert out.shape == (B, Cout, H, W), out.shape
    max_err = float(jnp.max(jnp.abs(out - ref)))
    # bf16 MXU operands (f32 accumulate) vs. HIGHEST-precision f32 reference.
    assert jnp.allclose(out, ref, atol=2e-2, rtol=2e-2), f"max abs err {max_err}"
    print("KERNEL_OK")
</pallas_src>

<mosaic_0001>
module attributes {stable_mosaic.version = 11 : i64} {
  func.func @_resnet_block_kernel(%arg0: i32, %arg1: memref<1x20x64xbf16, #tpu.memory_space<vmem>>, %arg2: memref<3x64x64xbf16, #tpu.memory_space<vmem>>, %arg3: memref<3x64x128xbf16, #tpu.memory_space<vmem>>, %arg4: memref<64x128xbf16, #tpu.memory_space<vmem>>, %arg5: memref<1x64xf32, #tpu.memory_space<vmem>>, %arg6: memref<1x128xf32, #tpu.memory_space<vmem>>, %arg7: memref<1x16x128xf32, #tpu.memory_space<vmem>>, %arg8: memref<18x64xbf16, #tpu.memory_space<vmem>>) attributes {dimension_semantics = [#tpu.dimension_semantics<parallel>], iteration_bounds = array<i64: 2>, scalar_prefetch = 0 : i64, scratch_operands = 1 : i64, tpu.core_type = #tpu.core_type<tc>, window_params = [{transform_indices = @transform_0, window_bounds = array<i64: 1, 20, 64>}, {pipeline_mode = #tpu.pipeline_mode<synchronous>, transform_indices = @transform_1, window_bounds = array<i64: 3, 64, 64>}, {pipeline_mode = #tpu.pipeline_mode<synchronous>, transform_indices = @transform_2, window_bounds = array<i64: 3, 64, 128>}, {pipeline_mode = #tpu.pipeline_mode<synchronous>, transform_indices = @transform_3, window_bounds = array<i64: 64, 128>}, {pipeline_mode = #tpu.pipeline_mode<synchronous>, transform_indices = @transform_4, window_bounds = array<i64: 1, 64>}, {pipeline_mode = #tpu.pipeline_mode<synchronous>, transform_indices = @transform_5, window_bounds = array<i64: 1, 128>}, {transform_indices = @transform_6, window_bounds = array<i64: 1, 16, 128>}]} {
    %cst = arith.constant 0.000000e+00 : f32
    %0 = vector.broadcast %cst : f32 to vector<18x64xf32>
    %c0 = arith.constant 0 : index
    %c0_0 = arith.constant 0 : index
    %c0_1 = arith.constant 0 : index
    %1 = vector.load %arg1[%c0, %c0_0, %c0_1] : memref<1x20x64xbf16, #tpu.memory_space<vmem>>, vector<1x18x64xbf16>
    %2 = vector.shape_cast %1 : vector<1x18x64xbf16> to vector<18x64xbf16>
    %c0_2 = arith.constant 0 : index
    %c0_3 = arith.constant 0 : index
    %c0_4 = arith.constant 0 : index
    %3 = vector.load %arg2[%c0_2, %c0_3, %c0_4] : memref<3x64x64xbf16, #tpu.memory_space<vmem>>, vector<1x64x64xbf16>
    %4 = vector.shape_cast %3 : vector<1x64x64xbf16> to vector<64x64xbf16>
    %cst_5 = arith.constant dense<0.000000e+00> : vector<18x64xf32>
    %5 = tpu.matmul %2, %4, %cst_5 {dimension_numbers = #tpu.dot_dimension_numbers<[1], [0], [0], [1], [0, 0, 1, 1], [], []>} : vector<18x64xbf16>, vector<64x64xbf16>, vector<18x64xf32> -> vector<18x64xf32>
    %6 = arith.addf %0, %5 : vector<18x64xf32>
    %c0_6 = arith.constant 0 : index
    %c1 = arith.constant 1 : index
    %c0_7 = arith.constant 0 : index
    %7 = vector.load %arg1[%c0_6, %c1, %c0_7] : memref<1x20x64xbf16, #tpu.memory_space<vmem>>, vector<1x18x64xbf16>
    %8 = vector.shape_cast %7 : vector<1x18x64xbf16> to vector<18x64xbf16>
    %c1_8 = arith.constant 1 : index
    %c0_9 = arith.constant 0 : index
    %c0_10 = arith.constant 0 : index
    %9 = vector.load %arg2[%c1_8, %c0_9, %c0_10] : memref<3x64x64xbf16, #tpu.memory_space<vmem>>, vector<1x64x64xbf16>
    %10 = vector.shape_cast %9 : vector<1x64x64xbf16> to vector<64x64xbf16>
    %cst_11 = arith.constant dense<0.000000e+00> : vector<18x64xf32>
    %11 = tpu.matmul %8, %10, %cst_11 {dimension_numbers = #tpu.dot_dimension_numbers<[1], [0], [0], [1], [0, 0, 1, 1], [], []>} : vector<18x64xbf16>, vector<64x64xbf16>, vector<18x64xf32> -> vector<18x64xf32>
    %12 = arith.addf %6, %11 : vector<18x64xf32>
    %c0_12 = arith.constant 0 : index
    %c2 = arith.constant 2 : index
    %c0_13 = arith.constant 0 : index
    %13 = vector.load %arg1[%c0_12, %c2, %c0_13] : memref<1x20x64xbf16, #tpu.memory_space<vmem>>, vector<1x18x64xbf16>
    %14 = vector.shape_cast %13 : vector<1x18x64xbf16> to vector<18x64xbf16>
    %c2_14 = arith.constant 2 : index
    %c0_15 = arith.constant 0 : index
    %c0_16 = arith.constant 0 : index
    %15 = vector.load %arg2[%c2_14, %c0_15, %c0_16] : memref<3x64x64xbf16, #tpu.memory_space<vmem>>, vector<1x64x64xbf16>
    %16 = vector.shape_cast %15 : vector<1x64x64xbf16> to vector<64x64xbf16>
    %cst_17 = arith.constant dense<0.000000e+00> : vector<18x64xf32>
    %17 = tpu.matmul %14, %16, %cst_17 {dimension_numbers = #tpu.dot_dimension_numbers<[1], [0], [0], [1], [0, 0, 1, 1], [], []>} : vector<18x64xbf16>, vector<64x64xbf16>, vector<18x64xf32> -> vector<18x64xf32>
    %18 = arith.addf %12, %17 : vector<18x64xf32>
    %c0_18 = arith.constant 0 : index
    %c0_19 = arith.constant 0 : index
    %19 = vector.load %arg5[%c0_18, %c0_19] : memref<1x64xf32, #tpu.memory_space<vmem>>, vector<1x64xf32>
    %20 = vector.broadcast %19 : vector<1x64xf32> to vector<18x64xf32>
    %21 = arith.addf %18, %20 : vector<18x64xf32>
    %cst_20 = arith.constant 0.000000e+00 : f32
    %22 = vector.broadcast %cst_20 : f32 to vector<18x64xf32>
    %23 = arith.maximumf %21, %22 : vector<18x64xf32>
    %24 = tpu.iota {dimensions = array<i32: 0>} : vector<18x1xi32>
    %c1_i32 = arith.constant 1 : i32
    %25 = vector.broadcast %c1_i32 : i32 to vector<18x1xi32>
    %26 = arith.cmpi sge, %24, %25 : vector<18x1xi32>
    %c16_i32 = arith.constant 16 : i32
    %27 = vector.broadcast %c16_i32 : i32 to vector<18x1xi32>
    %28 = arith.cmpi sle, %24, %27 : vector<18x1xi32>
    %29 = arith.andi %26, %28 : vector<18x1xi1>
    %cst_21 = arith.constant 0.000000e+00 : f32
    %30 = vector.shape_cast %29 : vector<18x1xi1> to vector<18x1xi1>
    %31 = vector.broadcast %30 : vector<18x1xi1> to vector<18x64xi1>
    %32 = vector.broadcast %cst_21 : f32 to vector<18x64xf32>
    %33 = arith.select %31, %23, %32 : vector<18x64xi1>, vector<18x64xf32>
    %34 = arith.truncf %33 : vector<18x64xf32> to vector<18x64xbf16>
    %c0_22 = arith.constant 0 : index
    %c0_23 = arith.constant 0 : index
    %35 = vector.load %arg8[%c0_22, %c0_23] : memref<18x64xbf16, #tpu.memory_space<vmem>>, vector<18x64xbf16>
    tpu.vector_store %arg8[%c0_22, %c0_23], %34 {strides = array<i32>} : memref<18x64xbf16, #tpu.memory_space<vmem>>, vector<18x64xbf16>,
    %c0_24 = arith.constant 0 : index
    %c2_25 = arith.constant 2 : index
    %c0_26 = arith.constant 0 : index
    %36 = vector.load %arg1[%c0_24, %c2_25, %c0_26] : memref<1x20x64xbf16, #tpu.memory_space<vmem>>, vector<1x16x64xbf16>
    %37 = vector.shape_cast %36 : vector<1x16x64xbf16> to vector<16x64xbf16>
    %c0_27 = arith.constant 0 : index
    %c0_28 = arith.constant 0 : index
    %38 = vector.load %arg4[%c0_27, %c0_28] : memref<64x128xbf16, #tpu.memory_space<vmem>>, vector<64x128xbf16>
    %cst_29 = arith.constant dense<0.000000e+00> : vector<16x128xf32>
    %39 = tpu.matmul %37, %38, %cst_29 {dimension_numbers = #tpu.dot_dimension_numbers<[1], [0], [0], [1], [0, 0, 1, 1], [], []>} : vector<16x64xbf16>, vector<64x128xbf16>, vector<16x128xf32> -> vector<16x128xf32>
    %c0_30 = arith.constant 0 : index
    %c0_31 = arith.constant 0 : index
    %40 = vector.load %arg8[%c0_30, %c0_31] : memref<18x64xbf16, #tpu.memory_space<vmem>>, vector<16x64xbf16>
    %c0_32 = arith.constant 0 : index
    %c0_33 = arith.constant 0 : index
    %c0_34 = arith.constant 0 : index
    %41 = vector.load %arg3[%c0_32, %c0_33, %c0_34] : memref<3x64x128xbf16, #tpu.memory_space<vmem>>, vector<1x64x128xbf16>
    %42 = vector.shape_cast %41 : vector<1x64x128xbf16> to vector<64x128xbf16>
    %cst_35 = arith.constant dense<0.000000e+00> : vector<16x128xf32>
    %43 = tpu.matmul %40, %42, %cst_35 {dimension_numbers = #tpu.dot_dimension_numbers<[1], [0], [0], [1], [0, 0, 1, 1], [], []>} : vector<16x64xbf16>, vector<64x128xbf16>, vector<16x128xf32> -> vector<16x128xf32>
    %44 = arith.addf %39, %43 : vector<16x128xf32>
    %c1_36 = arith.constant 1 : index
    %c0_37 = arith.constant 0 : index
    %45 = vector.load %arg8[%c1_36, %c0_37] : memref<18x64xbf16, #tpu.memory_space<vmem>>, vector<16x64xbf16>
    %c1_38 = arith.constant 1 : index
    %c0_39 = arith.constant 0 : index
    %c0_40 = arith.constant 0 : index
    %46 = vector.load %arg3[%c1_38, %c0_39, %c0_40] : memref<3x64x128xbf16, #tpu.memory_space<vmem>>, vector<1x64x128xbf16>
    %47 = vector.shape_cast %46 : vector<1x64x128xbf16> to vector<64x128xbf16>
    %cst_41 = arith.constant dense<0.000000e+00> : vector<16x128xf32>
    %48 = tpu.matmul %45, %47, %cst_41 {dimension_numbers = #tpu.dot_dimension_numbers<[1], [0], [0], [1], [0, 0, 1, 1], [], []>} : vector<16x64xbf16>, vector<64x128xbf16>, vector<16x128xf32> -> vector<16x128xf32>
    %49 = arith.addf %44, %48 : vector<16x128xf32>
    %c2_42 = arith.constant 2 : index
    %c0_43 = arith.constant 0 : index
    %50 = vector.load %arg8[%c2_42, %c0_43] : memref<18x64xbf16, #tpu.memory_space<vmem>>, vector<16x64xbf16>
    %c2_44 = arith.constant 2 : index
    %c0_45 = arith.constant 0 : index
    %c0_46 = arith.constant 0 : index
    %51 = vector.load %arg3[%c2_44, %c0_45, %c0_46] : memref<3x64x128xbf16, #tpu.memory_space<vmem>>, vector<1x64x128xbf16>
    %52 = vector.shape_cast %51 : vector<1x64x128xbf16> to vector<64x128xbf16>
    %cst_47 = arith.constant dense<0.000000e+00> : vector<16x128xf32>
    %53 = tpu.matmul %50, %52, %cst_47 {dimension_numbers = #tpu.dot_dimension_numbers<[1], [0], [0], [1], [0, 0, 1, 1], [], []>} : vector<16x64xbf16>, vector<64x128xbf16>, vector<16x128xf32> -> vector<16x128xf32>
    %54 = arith.addf %49, %53 : vector<16x128xf32>
    %c0_48 = arith.constant 0 : index
    %c0_49 = arith.constant 0 : index
    %55 = vector.load %arg6[%c0_48, %c0_49] : memref<1x128xf32, #tpu.memory_space<vmem>>, vector<1x128xf32>
    %56 = vector.broadcast %55 : vector<1x128xf32> to vector<16x128xf32>
    %57 = arith.addf %54, %56 : vector<16x128xf32>
    %cst_50 = arith.constant 0.000000e+00 : f32
    %58 = vector.broadcast %cst_50 : f32 to vector<16x128xf32>
    %59 = arith.maximumf %57, %58 : vector<16x128xf32>
    %c0_51 = arith.constant 0 : index
    %c0_52 = arith.constant 0 : index
    %c0_53 = arith.constant 0 : index
    %60 = vector.load %arg7[%c0_51, %c0_52, %c0_53] : memref<1x16x128xf32, #tpu.memory_space<vmem>>, vector<1x16x128xf32>
    %61 = vector.shape_cast %60 : vector<1x16x128xf32> to vector<16x128xf32>
    %62 = vector.shape_cast %59 : vector<16x128xf32> to vector<1x16x128xf32>
    tpu.vector_store %arg7[%c0_51, %c0_52, %c0_53], %62 {strides = array<i32>} : memref<1x16x128xf32, #tpu.memory_space<vmem>>, vector<1x16x128xf32>,
    return
  }
  func.func @transform_0(%arg0: i32) -> (i32, i32, i32) {
    %c0_i32 = arith.constant 0 : i32
    %c0_i32_0 = arith.constant 0 : i32
    %c0_i32_1 = arith.constant 0 : i32
    return %arg0, %c0_i32, %c0_i32_0 : i32, i32, i32
  }
  func.func @transform_1(%arg0: i32) -> (i32, i32, i32) {
    %c0_i32 = arith.constant 0 : i32
    %c0_i32_0 = arith.constant 0 : i32
    %c0_i32_1 = arith.constant 0 : i32
    %c0_i32_2 = arith.constant 0 : i32
    return %c0_i32, %c0_i32_0, %c0_i32_1 : i32, i32, i32
  }
  func.func @transform_2(%arg0: i32) -> (i32, i32, i32) {
    %c0_i32 = arith.constant 0 : i32
    %c0_i32_0 = arith.constant 0 : i32
    %c0_i32_1 = arith.constant 0 : i32
    %c0_i32_2 = arith.constant 0 : i32
    return %c0_i32, %c0_i32_0, %c0_i32_1 : i32, i32, i32
  }
  func.func @transform_3(%arg0: i32) -> (i32, i32) {
    %c0_i32 = arith.constant 0 : i32
    %c0_i32_0 = arith.constant 0 : i32
    %c0_i32_1 = arith.constant 0 : i32
    return %c0_i32, %c0_i32_0 : i32, i32
  }
  func.func @transform_4(%arg0: i32) -> (i32, i32) {
    %c0_i32 = arith.constant 0 : i32
    %c0_i32_0 = arith.constant 0 : i32
    %c0_i32_1 = arith.constant 0 : i32
    return %c0_i32, %c0_i32_0 : i32, i32
  }
  func.func @transform_5(%arg0: i32) -> (i32, i32) {
    %c0_i32 = arith.constant 0 : i32
    %c0_i32_0 = arith.constant 0 : i32
    %c0_i32_1 = arith.constant 0 : i32
    return %c0_i32, %c0_i32_0 : i32, i32
  }
  func.func @transform_6(%arg0: i32) -> (i32, i32, i32) {
    %c0_i32 = arith.constant 0 : i32
    %c0_i32_0 = arith.constant 0 : i32
    %c0_i32_1 = arith.constant 0 : i32
    return %arg0, %c0_i32, %c0_i32_0 : i32, i32, i32
  }
}

</mosaic_0001>

<llo_original>
// kernel: tile.18
$region0: #{tile.18}
  #allocation0 [shape = 's32[1]{0}', space=sflag, size = 0x4, scoped, tag = 'scoped memory for tile.18']
  %s0 = inlined_call_operand.vmem [shape: f32[8], index: 0, kind: input, shape index: {}]
  %s1 = inlined_call_operand.vmem [shape: f32[16,8], index: 1, kind: output, shape index: {}]
  // Predicated region
  $region2: #{tile.18} parent=0 // pred_check
    _
  $region3: #{tile.18} parent=0 // pred_check_branch
    %3 = sbr.rel (0) target = $region5
  $region4: #{tile.18} parent=0 // pred_region
    _
  $region5: #{tile.18} parent=0 // pred_fallthru
    _
  %v4 = vld [vmem:[%s0] ss:$0 sm:$0xff]
  %5 = vst [vmem:[%s1] sm:$0xff] %v4
  %s6 = scalar_lea.vmem %s1, 8
  %7 = vst [vmem:[%s6] sm:$0xff] %v4

// kernel: tile.19
$region0: #{tile.19}
  %s0 = inlined_call_operand.vmem [shape: f32[16,8], index: 0, kind: input, shape index: {}]
  %s1 = inlined_call_operand.vmem [shape: f32[1,128], index: 1, kind: output, shape index: {}]
  $region1: #{tile.19} parent=0
    #allocation0 [shape = 'u8[4096]{0}', space=vmem, size = 0x1000, scoped, tag = 'scoped mem for output reshape']
    %v2 = vld [vmem:[%s0] sm:$0x1]
    %vm3 = vcmask 64512
    %4 = vst.msk [vmem:[#allocation0] sm:$0x1] %vm3, %v2
    %s5 = scalar_lea.vmem %s0, 15
    %v6 = vld [vmem:[%s5] sm:$0x1]
    %7 = vrot.lane.b32.xlu0 %v6, 120
    %v8 = vpop.permute.xlu0 %7
    %vm9 = vcmask 1048512
    %10 = vst.msk [vmem:[#allocation0] sm:$0x1] %vm9, %v8
    %s11 = scalar_lea.vmem %s0, 14
    %v12 = vld [vmem:[%s11] sm:$0x1]
    %13 = vrot.lane.b32.xlu0 %v12, 112
    %v14 = vpop.permute.xlu0 %13
    %vm15 = vcmask 982912
    %16 = vst.msk [vmem:[#allocation0] sm:$0x1] %vm15, %v14
    %s17 = scalar_lea.vmem %s0, 13
    %v18 = vld [vmem:[%s17] sm:$0x1]
    %19 = vrot.lane.b32.xlu0 %v18, 104
    %v20 = vpop.permute.xlu0 %19
    %vm21 = vcmask 917312
    %22 = vst.msk [vmem:[#allocation0] sm:$0x1] %vm21, %v20
    %s23 = scalar_lea.vmem %s0, 12
    %v24 = vld [vmem:[%s23] sm:$0x1]
    %25 = vrot.lane.b32.xlu0 %v24, 96
    %v26 = vpop.permute.xlu0 %25
    %vm27 = vcmask 851712
    %28 = vst.msk [vmem:[#allocation0] sm:$0x1] %vm27, %v26
    %s29 = scalar_lea.vmem %s0, 11
    %v30 = vld [vmem:[%s29] sm:$0x1]
    %31 = vrot.lane.b32.xlu0 %v30, 88
    %v32 = vpop.permute.xlu0 %31
    %vm33 = vcmask 786112
    %34 = vst.msk [vmem:[#allocation0] sm:$0x1] %vm33, %v32
    %s35 = scalar_lea.vmem %s0, 10
    %v36 = vld [vmem:[%s35] sm:$0x1]
    %37 = vrot.lane.b32.xlu0 %v36, 80
    %v38 = vpop.permute.xlu0 %37
    %vm39 = vcmask 720512
    %40 = vst.msk [vmem:[#allocation0] sm:$0x1] %vm39, %v38
    %s41 = scalar_lea.vmem %s0, 9
    %v42 = vld [vmem:[%s41] sm:$0x1]
    %43 = vrot.lane.b32.xlu0 %v42, 72
    %v44 = vpop.permute.xlu0 %43
    %vm45 = vcmask 654912
    %46 = vst.msk [vmem:[#allocation0] sm:$0x1] %vm45, %v44
    %s47 = scalar_lea.vmem %s0, 8
    %v48 = vld [vmem:[%s47] sm:$0x1]
    %49 = vrot.lane.b32.xlu0 %v48, 64
    %v50 = vpop.permute.xlu0 %49
    %vm51 = vcmask 589312
    %52 = vst.msk [vmem:[#allocation0] sm:$0x1] %vm51, %v50
    %s53 = scalar_lea.vmem %s0, 7
    %v54 = vld [vmem:[%s53] sm:$0x1]
    %55 = vrot.lane.b32.xlu0 %v54, 56
    %v56 = vpop.permute.xlu0 %55
    %vm57 = vcmask 523712
    %58 = vst.msk [vmem:[#allocation0] sm:$0x1] %vm57, %v56
    %s59 = scalar_lea.vmem %s0, 6
    %v60 = vld [vmem:[%s59] sm:$0x1]
    %61 = vrot.lane.b32.xlu0 %v60, 48
    %v62 = vpop.permute.xlu0 %61
    %vm63 = vcmask 458112
    %64 = vst.msk [vmem:[#allocation0] sm:$0x1] %vm63, %v62
    %s65 = scalar_lea.vmem %s0, 5
    %v66 = vld [vmem:[%s65] sm:$0x1]
    %67 = vrot.lane.b32.xlu0 %v66, 40
    %v68 = vpop.permute.xlu0 %67
    %vm69 = vcmask 392512
    %70 = vst.msk [vmem:[#allocation0] sm:$0x1] %vm69, %v68
    %s71 = scalar_lea.vmem %s0, 4
    %v72 = vld [vmem:[%s71] sm:$0x1]
    %73 = vrot.lane.b32.xlu0 %v72, 32
    %v74 = vpop.permute.xlu0 %73
    %vm75 = vcmask 326912
    %76 = vst.msk [vmem:[#allocation0] sm:$0x1] %vm75, %v74
    %s77 = scalar_lea.vmem %s0, 3
    %v78 = vld [vmem:[%s77] sm:$0x1]
    %79 = vrot.lane.b32.xlu0 %v78, 24
    %v80 = vpop.permute.xlu0 %79
    %vm81 = vcmask 261312
    %82 = vst.msk [vmem:[#allocation0] sm:$0x1] %vm81, %v80
    %s83 = scalar_lea.vmem %s0, 2
    %v84 = vld [vmem:[%s83] sm:$0x1]
    %85 = vrot.lane.b32.xlu0 %v84, 16
    %v86 = vpop.permute.xlu0 %85
    %vm87 = vcmask 195712
    %88 = vst.msk [vmem:[#allocation0] sm:$0x1] %vm87, %v86
    %s89 = scalar_lea.vmem %s0, 1
    %v90 = vld [vmem:[%s89] sm:$0x1]
    %91 = vrot.lane.b32.xlu0 %v90, 8
    %v92 = vpop.permute.xlu0 %91
    %vm93 = vcmask 130112
    %94 = vst.msk [vmem:[#allocation0] sm:$0x1] %vm93, %v92
    %s96 = sshllo.u32 0, 1
    %v98 = vld [vmem:[#allocation0] sm:%s96]
    %s99 = sshllo.u32 0, 1
    %100 = vst [vmem:[%s1] sm:%s99] %v98

// kernel: tile.13
$region0: #{tile.13}
  #allocation0 [shape = 's32[1]{0}', space=sflag, size = 0x4, scoped, tag = 'scoped memory for tile.13']
  %s0 = inlined_call_operand.vmem [shape: f32[4], index: 0, kind: input, shape index: {}]
  %s1 = inlined_call_operand.vmem [shape: f32[16,4], index: 1, kind: output, shape index: {}]
  // Predicated region
  $region2: #{tile.13} parent=0 // pred_check
    _
  $region3: #{tile.13} parent=0 // pred_check_branch
    %3 = sbr.rel (0) target = $region5
  $region4: #{tile.13} parent=0 // pred_region
    _
  $region5: #{tile.13} parent=0 // pred_fallthru
    _
  %v4 = vld [vmem:[%s0] ss:$0 sm:$0xff]
  %5 = vst [vmem:[%s1] sm:$0xff] %v4
  %s6 = scalar_lea.vmem %s1, 8
  %7 = vst [vmem:[%s6] sm:$0xff] %v4

// kernel: tile.14
$region0: #{tile.14}
  %s0 = inlined_call_operand.vmem [shape: f32[16,4], index: 0, kind: input, shape index: {}]
  %s1 = inlined_call_operand.vmem [shape: f32[1,64], index: 1, kind: output, shape index: {}]
  $region1: #{tile.14} parent=0
    #allocation0 [shape = 'u8[4096]{0}', space=vmem, size = 0x1000, scoped, tag = 'scoped mem for output reshape']
    %v2 = vld [vmem:[%s0] sm:$0x1]
    %vm3 = vcmask 31744
    %4 = vst.msk [vmem:[#allocation0] sm:$0x1] %vm3, %v2
    %s5 = scalar_lea.vmem %s0, 15
    %v6 = vld [vmem:[%s5] sm:$0x1]
    %7 = vrot.lane.b32.xlu0 %v6, 60
    %v8 = vpop.permute.xlu0 %7
    %vm9 = vcmask 523744
    %10 = vst.msk [vmem:[#allocation0] sm:$0x1] %vm9, %v8
    %s11 = scalar_lea.vmem %s0, 14
    %v12 = vld [vmem:[%s11] sm:$0x1]
    %13 = vrot.lane.b32.xlu0 %v12, 56
    %v14 = vpop.permute.xlu0 %13
    %vm15 = vcmask 490944
    %16 = vst.msk [vmem:[#allocation0] sm:$0x1] %vm15, %v14
    %s17 = scalar_lea.vmem %s0, 13
    %v18 = vld [vmem:[%s17] sm:$0x1]
    %19 = vrot.lane.b32.xlu0 %v18, 52
    %v20 = vpop.permute.xlu0 %19
    %vm21 = vcmask 458144
    %22 = vst.msk [vmem:[#allocation0] sm:$0x1] %vm21, %v20
    %s23 = scalar_lea.vmem %s0, 12
    %v24 = vld [vmem:[%s23] sm:$0x1]
    %25 = vrot.lane.b32.xlu0 %v24, 48
    %v26 = vpop.permute.xlu0 %25
    %vm27 = vcmask 425344
    %28 = vst.msk [vmem:[#allocation0] sm:$0x1] %vm27, %v26
    %s29 = scalar_lea.vmem %s0, 11
    %v30 = vld [vmem:[%s29] sm:$0x1]
    %31 = vrot.lane.b32.xlu0 %v30, 44
    %v32 = vpop.permute.xlu0 %31
    %vm33 = vcmask 392544
    %34 = vst.msk [vmem:[#allocation0] sm:$0x1] %vm33, %v32
    %s35 = scalar_lea.vmem %s0, 10
    %v36 = vld [vmem:[%s35] sm:$0x1]
    %37 = vrot.lane.b32.xlu0 %v36, 40
    %v38 = vpop.permute.xlu0 %37
    %vm39 = vcmask 359744
    %40 = vst.msk [vmem:[#allocation0] sm:$0x1] %vm39, %v38
    %s41 = scalar_lea.vmem %s0, 9
    %v42 = vld [vmem:[%s41] sm:$0x1]
    %43 = vrot.lane.b32.xlu0 %v42, 36
    %v44 = vpop.permute.xlu0 %43
    %vm45 = vcmask 326944
    %46 = vst.msk [vmem:[#allocation0] sm:$0x1] %vm45, %v44
    %s47 = scalar_lea.vmem %s0, 8
    %v48 = vld [vmem:[%s47] sm:$0x1]
    %49 = vrot.lane.b32.xlu0 %v48, 32
    %v50 = vpop.permute.xlu0 %49
    %vm51 = vcmask 294144
    %52 = vst.msk [vmem:[#allocation0] sm:$0x1] %vm51, %v50
    %s53 = scalar_lea.vmem %s0, 7
    %v54 = vld [vmem:[%s53] sm:$0x1]
    %55 = vrot.lane.b32.xlu0 %v54, 28
    %v56 = vpop.permute.xlu0 %55
    %vm57 = vcmask 261344
    %58 = vst.msk [vmem:[#allocation0] sm:$0x1] %vm57, %v56
    %s59 = scalar_lea.vmem %s0, 6
    %v60 = vld [vmem:[%s59] sm:$0x1]
    %61 = vrot.lane.b32.xlu0 %v60, 24
    %v62 = vpop.permute.xlu0 %61
    %vm63 = vcmask 228544
    %64 = vst.msk [vmem:[#allocation0] sm:$0x1] %vm63, %v62
    %s65 = scalar_lea.vmem %s0, 5
    %v66 = vld [vmem:[%s65] sm:$0x1]
    %67 = vrot.lane.b32.xlu0 %v66, 20
    %v68 = vpop.permute.xlu0 %67
    %vm69 = vcmask 195744
    %70 = vst.msk [vmem:[#allocation0] sm:$0x1] %vm69, %v68
    %s71 = scalar_lea.vmem %s0, 4
    %v72 = vld [vmem:[%s71] sm:$0x1]
    %73 = vrot.lane.b32.xlu0 %v72, 16
    %v74 = vpop.permute.xlu0 %73
    %vm75 = vcmask 162944
    %76 = vst.msk [vmem:[#allocation0] sm:$0x1] %vm75, %v74
    %s77 = scalar_lea.vmem %s0, 3
    %v78 = vld [vmem:[%s77] sm:$0x1]
    %79 = vrot.lane.b32.xlu0 %v78, 12
    %v80 = vpop.permute.xlu0 %79
    %vm81 = vcmask 130144
    %82 = vst.msk [vmem:[#allocation0] sm:$0x1] %vm81, %v80
    %s83 = scalar_lea.vmem %s0, 2
    %v84 = vld [vmem:[%s83] sm:$0x1]
    %85 = vrot.lane.b32.xlu0 %v84, 8
    %v86 = vpop.permute.xlu0 %85
    %vm87 = vcmask 97344
    %88 = vst.msk [vmem:[#allocation0] sm:$0x1] %vm87, %v86
    %s89 = scalar_lea.vmem %s0, 1
    %v90 = vld [vmem:[%s89] sm:$0x1]
    %91 = vrot.lane.b32.xlu0 %v90, 4
    %v92 = vpop.permute.xlu0 %91
    %vm93 = vcmask 64544
    %94 = vst.msk [vmem:[#allocation0] sm:$0x1] %vm93, %v92
    %s96 = sshllo.u32 0, 1
    %v98 = vld [vmem:[#allocation0] sm:%s96]
    %s99 = sshllo.u32 0, 1
    %100 = vst [vmem:[%s1] sm:%s99] %v98

// kernel: resnet_block_forward.1
$region0: #{resnet_block_forward.1}
  #allocation0 [shape = 'u32[]', space=smem, size = 0x4, offset = 0x4, fixed_abs, tag = 'smem constant byte address 0x4 - core index']
  #allocation1 [shape = 'u32[144,128]{1,0:T(1,128)}', space=vmem, size = 0x12000, scoped, tag = 'internal scratch']
  #allocation2 [shape = 'bf16[18,64]{1,0:T(8,128)(2,1)}', space=vmem, size = 0x1800, scoped, tag = 'scratch operand']
  %s0 = inlined_call_operand.vmem [shape: bf16[2,20,64], index: 0, kind: input, shape index: {}]
  %s1 = inlined_call_operand.vmem [shape: bf16[3,64,64], index: 1, kind: input, shape index: {}]
  %s2 = inlined_call_operand.vmem [shape: bf16[3,64,128], index: 2, kind: input, shape index: {}]
  %s3 = inlined_call_operand.vmem [shape: bf16[64,128], index: 3, kind: input, shape index: {}]
  %s4 = inlined_call_operand.vmem [shape: f32[1,64], index: 4, kind: input, shape index: {}]
  %s5 = inlined_call_operand.vmem [shape: f32[1,128], index: 5, kind: input, shape index: {}]
  %s6 = inlined_call_operand.vmem [shape: f32[2,16,128], index: 6, kind: output, shape index: {}]
  %s7 = sld [smem:[#allocation0]]
  $region57: #{resnet_block_forward.1} parent=0
    _
  %s9 = ssub.s32 1, %s7
  %s10 = scalar_select 0, %s9, %s7
  loop: start=0, step=1, limit=4
  $region2: #{resnet_block_forward.1} parent=0 // loop_pre_header
    _
  $region3: #{resnet_block_forward.1} parent=0 // loop_header
    %s12 = sphi 0, %s16
    %p13 = scmp.ge.s32.totalorder %s12, 4
    %s22 = sphi 0, %s24
    %s25 = sphi 0, %s22
    %s26 = sphi 0, %s25
    %s42 = sphi 0, %s26
    %s46 = sphi 0, %s46
    %s48 = sphi 0, %s46
    %s49 = sphi 0, %s48
    %s63 = sphi 0, %s49
    %s67 = sphi 0, %s67
    %s69 = sphi 0, %s67
    %s70 = sphi 0, %s69
    %s84 = sphi 0, %s70
    %s88 = sphi 0, %s88
    %s90 = sphi 0, %s88
    %s91 = sphi 0, %s90
    %s105 = sphi 0, %s91
    %s109 = sphi 0, %s109
    %s111 = sphi 0, %s109
    %s112 = sphi 0, %s111
    %s126 = sphi 0, %s112
    %s130 = sphi 0, %s130
    %s132 = sphi 0, %s130
    %s133 = sphi 0, %s132
    %s147 = sphi 0, %s133
    %s153 = sphi 0, %s155
    %s156 = sphi 0, %s153
    %s157 = sphi 0, %s156
    %s173 = sphi 0, %s157
  $region4: #{resnet_block_forward.1} parent=0 // loop_header_branch
    %15 = sbr.rel (%p13) target = $region8
  $region5: #{resnet_block_forward.1} parent=0 // loop_body
    %s17 = ssub.s32 %s12, 1
    %s18 = ssub.s32 %s12, 2
    %s19 = sadd.s32 %s12, 1
    %s20 = ssub.s32 %s12, %s19
    %p21 = scmp.eq.s32.totalorder %s20, 0
    %s23 = sadd.s32 %s22, 1
    %s24 = scalar_select %p21, %s22, %s23
    %p27 = pneg %p21
    %p28 = scmp.eq.s32.totalorder %s12, 1
    %p29 = por %p27, %p28
    %p30 = scmp.ne.s32.totalorder %s22, %s25
    %p31 = scmp.eq.s32.totalorder %s12, 0
    %p32 = por %p30, %p31
    %p33 = scmp.ne.s32.totalorder %s22, %s25
    %p34 = scmp.eq.s32.totalorder %s17, 1
    %p35 = por %p33, %p34
    %p36 = scmp.ne.s32.totalorder %s25, %s26
    %p37 = scmp.eq.s32.totalorder %s17, 0
    %p38 = por %p36, %p37
    %p39 = scmp.ne.s32.totalorder %s25, %s26
    %p40 = scmp.eq.s32.totalorder %s18, 1
    %p41 = por %p39, %p40
    %p43 = scmp.ne.s32.totalorder %s26, %s42
    %p44 = scmp.eq.s32.totalorder %s18, 0
    %p45 = por %p43, %p44
    %s47 = sadd.s32 %s46, 1
    %p50 = scmp.eq.s32.totalorder %s12, 1
    %p51 = scmp.ne.s32.totalorder %s46, %s48
    %p52 = scmp.eq.s32.totalorder %s12, 0
    %p53 = por %p51, %p52
    %p54 = scmp.ne.s32.totalorder %s46, %s48
    %p55 = scmp.eq.s32.totalorder %s17, 1
    %p56 = por %p54, %p55
    %p57 = scmp.ne.s32.totalorder %s48, %s49
    %p58 = scmp.eq.s32.totalorder %s17, 0
    %p59 = por %p57, %p58
    %p60 = scmp.ne.s32.totalorder %s48, %s49
    %p61 = scmp.eq.s32.totalorder %s18, 1
    %p62 = por %p60, %p61
    %p64 = scmp.ne.s32.totalorder %s49, %s63
    %p65 = scmp.eq.s32.totalorder %s18, 0
    %p66 = por %p64, %p65
    %s68 = sadd.s32 %s67, 1
    %p71 = scmp.eq.s32.totalorder %s12, 1
    %p72 = scmp.ne.s32.totalorder %s67, %s69
    %p73 = scmp.eq.s32.totalorder %s12, 0
    %p74 = por %p72, %p73
    %p75 = scmp.ne.s32.totalorder %s67, %s69
    %p76 = scmp.eq.s32.totalorder %s17, 1
    %p77 = por %p75, %p76
    %p78 = scmp.ne.s32.totalorder %s69, %s70
    %p79 = scmp.eq.s32.totalorder %s17, 0
    %p80 = por %p78, %p79
    %p81 = scmp.ne.s32.totalorder %s69, %s70
    %p82 = scmp.eq.s32.totalorder %s18, 1
    %p83 = por %p81, %p82
    %p85 = scmp.ne.s32.totalorder %s70, %s84
    %p86 = scmp.eq.s32.totalorder %s18, 0
    %p87 = por %p85, %p86
    %s89 = sadd.s32 %s88, 1
    %p92 = scmp.eq.s32.totalorder %s12, 1
    %p93 = scmp.ne.s32.totalorder %s88, %s90
    %p94 = scmp.eq.s32.totalorder %s12, 0
    %p95 = por %p93, %p94
    %p96 = scmp.ne.s32.totalorder %s88, %s90
    %p97 = scmp.eq.s32.totalorder %s17, 1
    %p98 = por %p96, %p97
    %p99 = scmp.ne.s32.totalorder %s90, %s91
    %p100 = scmp.eq.s32.totalorder %s17, 0
    %p101 = por %p99, %p100
    %p102 = scmp.ne.s32.totalorder %s90, %s91
    %p103 = scmp.eq.s32.totalorder %s18, 1
    %p104 = por %p102, %p103
    %p106 = scmp.ne.s32.totalorder %s91, %s105
    %p107 = scmp.eq.s32.totalorder %s18, 0
    %p108 = por %p106, %p107
    %s110 = sadd.s32 %s109, 1
    %p113 = scmp.eq.s32.totalorder %s12, 1
    %p114 = scmp.ne.s32.totalorder %s109, %s111
    %p115 = scmp.eq.s32.totalorder %s12, 0
    %p116 = por %p114, %p115
    %p117 = scmp.ne.s32.totalorder %s109, %s111
    %p118 = scmp.eq.s32.totalorder %s17, 1
    %p119 = por %p117, %p118
    %p120 = scmp.ne.s32.totalorder %s111, %s112
    %p121 = scmp.eq.s32.totalorder %s17, 0
    %p122 = por %p120, %p121
    %p123 = scmp.ne.s32.totalorder %s111, %s112
    %p124 = scmp.eq.s32.totalorder %s18, 1
    %p125 = por %p123, %p124
    %p127 = scmp.ne.s32.totalorder %s112, %s126
    %p128 = scmp.eq.s32.totalorder %s18, 0
    %p129 = por %p127, %p128
    %s131 = sadd.s32 %s130, 1
    %p134 = scmp.eq.s32.totalorder %s12, 1
    %p135 = scmp.ne.s32.totalorder %s130, %s132
    %p136 = scmp.eq.s32.totalorder %s12, 0
    %p137 = por %p135, %p136
    %p138 = scmp.ne.s32.totalorder %s130, %s132
    %p139 = scmp.eq.s32.totalorder %s17, 1
    %p140 = por %p138, %p139
    %p141 = scmp.ne.s32.totalorder %s132, %s133
    %p142 = scmp.eq.s32.totalorder %s17, 0
    %p143 = por %p141, %p142
    %p144 = scmp.ne.s32.totalorder %s132, %s133
    %p145 = scmp.eq.s32.totalorder %s18, 1
    %p146 = por %p144, %p145
    %p148 = scmp.ne.s32.totalorder %s133, %s147
    %p149 = scmp.eq.s32.totalorder %s18, 0
    %p150 = por %p148, %p149
    %s151 = ssub.s32 %s12, %s19
    %p152 = scmp.eq.s32.totalorder %s151, 0
    %s154 = sadd.s32 %s153, 1
    %s155 = scalar_select %p152, %s153, %s154
    %p158 = pneg %p152
    %p159 = scmp.eq.s32.totalorder %s12, 1
    %p160 = por %p158, %p159
    %p161 = scmp.ne.s32.totalorder %s153, %s156
    %p162 = scmp.eq.s32.totalorder %s12, 0
    %p163 = por %p161, %p162
    %p164 = scmp.ne.s32.totalorder %s153, %s156
    %p165 = scmp.eq.s32.totalorder %s17, 1
    %p166 = por %p164, %p165
    %p167 = scmp.ne.s32.totalorder %s156, %s157
    %p168 = scmp.eq.s32.totalorder %s17, 0
    %p169 = por %p167, %p168
    %p170 = scmp.ne.s32.totalorder %s156, %s157
    %p171 = scmp.eq.s32.totalorder %s18, 1
    %p172 = por %p170, %p171
    %p174 = scmp.ne.s32.totalorder %s157, %s173
    %p175 = scmp.eq.s32.totalorder %s18, 0
    %p176 = por %p174, %p175
    %p177 = scmp.le.s32.totalorder 1, %s12
    %p178 = scmp.lt.s32.totalorder %s12, 3
    %p179 = pnand %p177, %p178
    %p180 = pneg %p179
    // Predicated region
    $region9: #{resnet_block_forward.1} parent=5 // pred_check
      _
    $region10: #{resnet_block_forward.1} parent=5 // pred_check_branch
      %182 = sbr.rel (%p179) target = $region12
    $region11: #{resnet_block_forward.1} parent=5 // pred_region
      %s183 = ssub.s32 %s12, 1
      // Predicated region
      $region13: #{resnet_block_forward.1} parent=11 // pred_check
        %p184 = pneg %p59
      $region14: #{resnet_block_forward.1} parent=11 // pred_check_branch
        %186 = sbr.rel (%p184) target = $region16
      $region15: #{resnet_block_forward.1} parent=11 // pred_region
        _
      $region16: #{resnet_block_forward.1} parent=11 // pred_fallthru
        _
      // Predicated region
      $region17: #{resnet_block_forward.1} parent=11 // pred_check
        %p187 = pneg %p80
      $region18: #{resnet_block_forward.1} parent=11 // pred_check_branch
        %189 = sbr.rel (%p187) target = $region20
      $region19: #{resnet_block_forward.1} parent=11 // pred_region
        _
      $region20: #{resnet_block_forward.1} parent=11 // pred_fallthru
        _
      // Predicated region
      $region21: #{resnet_block_forward.1} parent=11 // pred_check
        %p190 = pneg %p101
      $region22: #{resnet_block_forward.1} parent=11 // pred_check_branch
        %192 = sbr.rel (%p190) target = $region24
      $region23: #{resnet_block_forward.1} parent=11 // pred_region
        _
      $region24: #{resnet_block_forward.1} parent=11 // pred_fallthru
        _
      // Predicated region
      $region25: #{resnet_block_forward.1} parent=11 // pred_check
        %p193 = pneg %p122
      $region26: #{resnet_block_forward.1} parent=11 // pred_check_branch
        %195 = sbr.rel (%p193) target = $region28
      $region27: #{resnet_block_forward.1} parent=11 // pred_region
        _
      $region28: #{resnet_block_forward.1} parent=11 // pred_fallthru
        _
      // Predicated region
      $region29: #{resnet_block_forward.1} parent=11 // pred_check
        %p196 = pneg %p143
      $region30: #{resnet_block_forward.1} parent=11 // pred_check_branch
        %198 = sbr.rel (%p196) target = $region32
      $region31: #{resnet_block_forward.1} parent=11 // pred_region
        _
      $region32: #{resnet_block_forward.1} parent=11 // pred_fallthru
        _
    $region12: #{resnet_block_forward.1} parent=5 // pred_fallthru
      _
    %p199 = scmp.lt.s32.totalorder %s12, 2
    // Predicated region
    $region33: #{resnet_block_forward.1} parent=5 // pred_check
      %p200 = pneg %p199
    $region34: #{resnet_block_forward.1} parent=5 // pred_check_branch
      %202 = sbr.rel (%p200) target = $region36
    $region35: #{resnet_block_forward.1} parent=5 // pred_region
      // Predicated region
      $region37: #{resnet_block_forward.1} parent=35 // pred_check
        %p203 = pneg %p32
      $region38: #{resnet_block_forward.1} parent=35 // pred_check_branch
        %205 = sbr.rel (%p203) target = $region40
      $region39: #{resnet_block_forward.1} parent=35 // pred_region
        %p206 = scmp.lt.s32.totalorder %s12, 1
        %s207 = scalar_select %p206, %s12, 1
        %s208 = smul.addr %s207, 3
        %s209 = smul.addr %s208, 4
        %s210 = scalar_lea.vmem %s0, %s209
      $region40: #{resnet_block_forward.1} parent=35 // pred_fallthru
        _
    $region36: #{resnet_block_forward.1} parent=5 // pred_fallthru
      _
    %p211 = scmp.le.s32.totalorder 1, %s12
    %p212 = scmp.lt.s32.totalorder %s12, 3
    %p213 = pnand %p211, %p212
    %p214 = pneg %p213
    // Predicated region
    $region41: #{resnet_block_forward.1} parent=5 // pred_check
      _
    $region42: #{resnet_block_forward.1} parent=5 // pred_check_branch
      %216 = sbr.rel (%p213) target = $region44
    $region43: #{resnet_block_forward.1} parent=5 // pred_region
      %s217 = ssub.s32 %s12, 1
      %p218 = scmp.lt.s32.totalorder %s17, 1
      %s219 = scalar_select %p218, %s17, 1
      %s220 = smul.addr %s219, 3
      %s221 = smul.addr %s220, 4
      %s222 = scalar_lea.vmem %s0, %s221
      %p223 = pneg %p38
      %p224 = pneg %p35
      %p225 = pneg %p59
      %p226 = pneg %p56
      %p227 = pneg %p80
      %p228 = pneg %p77
      %p229 = pneg %p101
      %p230 = pneg %p98
      %p231 = pneg %p122
      %p232 = pneg %p119
      %p233 = pneg %p143
      %p234 = pneg %p140
      %p235 = pneg %p169
      %p236 = pneg %p166
      %p237 = scmp.lt.s32.totalorder %s17, 1
      %s238 = scalar_select %p237, %s17, 1
      %s239 = smul.addr %s238, 2
      %s240 = smul.addr %s239, 8
      %s241 = scalar_lea.vmem %s6, %s240
      %p242 = scmp.lt.s32.totalorder %s17, 1
      %s243 = scalar_select %p242, %s17, 1
      %s244 = smul.addr %s243, 3
      %s245 = smul.addr %s244, 4
      %s246 = scalar_lea.vmem %s0, %s245
      %p247 = scmp.lt.s32.totalorder %s17, 1
      %s248 = scalar_select %p247, %s17, 1
      %s249 = smul.addr %s248, 2
      %s250 = smul.addr %s249, 8
      %s251 = scalar_lea.vmem %s6, %s250
      %v253 = vld [vmem:[%s246] sm:$0xf]
      %v254 = vld [vmem:[%s246 + $0x4] sm:$0xf]
      %v255 = vld [vmem:[%s246 + $0x8] sm:$0x1]
      %v256 = vld [vmem:[%s1] sm:$0xf]
      %v257 = vld [vmem:[%s1 + $0x4] sm:$0xf]
      %v258 = vld [vmem:[%s1 + $0x8] sm:$0xf]
      %v259 = vld [vmem:[%s1 + $0xc] sm:$0xf]
      %v260 = vld [vmem:[%s1 + $0x10] sm:$0xf]
      %v261 = vld [vmem:[%s1 + $0x14] sm:$0xf]
      %v262 = vld [vmem:[%s1 + $0x18] sm:$0xf]
      %v263 = vld [vmem:[%s1 + $0x1c] sm:$0xf]
      %v264 = vld [vmem:[%s246 + $0x8] sm:$0x3]
      %s265 = scalar_lea.vmem %s1, 32
      %v266 = vld [vmem:[%s265] sm:$0xf]
      %v267 = vld [vmem:[%s265 + $0x4] sm:$0xf]
      %v268 = vld [vmem:[%s265 + $0x8] sm:$0xf]
      %v269 = vld [vmem:[%s265 + $0xc] sm:$0xf]
      %v270 = vld [vmem:[%s265 + $0x10] sm:$0xf]
      %v271 = vld [vmem:[%s265 + $0x14] sm:$0xf]
      %v272 = vld [vmem:[%s265 + $0x18] sm:$0xf]
      %v273 = vld [vmem:[%s265 + $0x1c] sm:$0xf]
      %v277 = vunpack.c.l.b16 %v253
      %v278 = vunpack.c.l.b16 %v254
      %v279 = vunpack.c.l.b16 %v264
      %v280 = vpack.c.b16 %v278, %v277
      %v281 = vpack.c.b16 %v279, %v279
      %vm282 = vsmask.f32 7424
      %v284 = vshrl.u32 %v280, 16
      %v286 = vshll.u32 %v280, 16
      %v288 = vrot.slane %v286, 1
      %v289 = vor.u32 %v284, %v288
      %v291 = vshll.u32 %v281, 16
      %v293 = vrot.slane %v291, 1
      %v294 = vsel %vm282, %v289, %v293
      %v295 = vshrl.u32 %v281, 16
      %v297 = vor.u32 %v295, %v293
      %v306 = vunpack.c.l.b16 %v266
      %v307 = vunpack.c.l.b16 %v267
      %v308 = vunpack.c.l.b16 %v268
      %v309 = vunpack.c.l.b16 %v269
      %v310 = vunpack.c.l.b16 %v270
      %v311 = vunpack.c.l.b16 %v271
      %v312 = vunpack.c.l.b16 %v272
      %v313 = vunpack.c.l.b16 %v273
      %v314 = vpack.c.b16 %v307, %v306
      %v315 = vpack.c.b16 %v309, %v308
      %v316 = vpack.c.b16 %v311, %v310
      %v317 = vpack.c.b16 %v313, %v312
      %vm322 = vcmask 523264
      %v324 = vsel %vm322, %v294, 0
      %v327 = vsel %vm322, %v297, 0
      %329 = vmatprep.subr.bf16.mxu0 0
      %330 = vmatpush1.bf16.msra.mxu0 %v314
      %331 = vmatprep.subr.bf16.mxu0 0
      %332 = vmatpush1.bf16.msra.mxu0 %v315
      %333 = vmatprep.subr.bf16.mxu0 0
      %334 = vmatpush1.bf16.msra.mxu0 %v316
      %335 = vmatprep.subr.bf16.mxu0 0
      %336 = vmatpush1.bf16.msra.mxu0 %v317
      %337 = vmatprep.subr.bf16.mxu0 0
      %338 = vmatpush1.bf16.msra.mxu0 0
      %339 = vmatprep.subr.bf16.mxu0 0
      %340 = vmatpush1.bf16.msra.mxu0 0
      %341 = vmatprep.subr.bf16.mxu0 0
      %342 = vmatpush1.bf16.msra.mxu0 0
      %343 = vmatprep.subr.bf16.mxu0 0
      %344 = vmatpush1.bf16.msra.mxu0 0
      %345 = vmatprep.subr.bf16.mxu0 0
      %346 = vmatpush1.bf16.msra.mxu0 0
      %347 = vmatprep.subr.bf16.mxu0 0
      %348 = vmatpush1.bf16.msra.mxu0 0
      %349 = vmatprep.subr.bf16.mxu0 0
      %350 = vmatpush1.bf16.msra.mxu0 0
      %351 = vmatprep.subr.bf16.mxu0 0
      %352 = vmatpush1.bf16.msra.mxu0 0
      %353 = vmatprep.subr.bf16.mxu0 0
      %354 = vmatpush1.bf16.msra.mxu0 0
      %355 = vmatprep.subr.bf16.mxu0 0
      %356 = vmatpush1.bf16.msra.mxu0 0
      %357 = vmatprep.subr.bf16.mxu0 0
      %358 = vmatpush1.bf16.msra.mxu0 0
      %359 = vmatprep.subr.bf16.mxu0 0
      %360 = vmatpush1.bf16.msra.mxu0 0
      %361 = vmatprep.mubr.bf16.mxu0 0
      %362 = vmatmul.mubr.bf16.gmra.mrb[0].mxu0 %v324
      %v363 = vpop.f32.mrb[0].mxu0
      %v364 = vadd.f32 0.0, %v363
      %v365 = vpop.f32.mrb[0].mxu0
      %v366 = vpop.f32.mrb[0].mxu0
      %v367 = vadd.f32 0.0, %v366
      %v368 = vpop.f32.mrb[0].mxu0
      %369 = vmatprep.mubr.bf16.mxu0 0
      %370 = vmatmul.mubr.bf16.gmra.mrb[0].mxu0 %v327
      %v371 = vpop.f32.mrb[0].mxu0
      %v372 = vadd.f32 0.0, %v371
      %v373 = vpop.f32.mrb[0].mxu0
      %v374 = vpop.f32.mrb[0].mxu0
      %v375 = vpop.f32.mrb[0].mxu0
      %376 = vdwg.mxu0
      %v378 = vunpack.c.l.b16 %v255
      %v379 = vpack.c.b16 %v378, %v378
      %v388 = vunpack.c.l.b16 %v256
      %v389 = vunpack.c.l.b16 %v257
      %v390 = vunpack.c.l.b16 %v258
      %v391 = vunpack.c.l.b16 %v259
      %v392 = vunpack.c.l.b16 %v260
      %v393 = vunpack.c.l.b16 %v261
      %v394 = vunpack.c.l.b16 %v262
      %v395 = vunpack.c.l.b16 %v263
      %v396 = vpack.c.b16 %v389, %v388
      %v397 = vpack.c.b16 %v391, %v390
      %v398 = vpack.c.b16 %v393, %v392
      %v399 = vpack.c.b16 %v395, %v394
      %v404 = vsel %vm322, %v280, 0
      %v407 = vsel %vm322, %v379, 0
      %409 = vmatprep.subr.bf16.mxu0 0
      %410 = vmatpush1.bf16.msra.mxu0 %v396
      %411 = vmatprep.subr.bf16.mxu0 0
      %412 = vmatpush1.bf16.msra.mxu0 %v397
      %413 = vmatprep.subr.bf16.mxu0 0
      %414 = vmatpush1.bf16.msra.mxu0 %v398
      %415 = vmatprep.subr.bf16.mxu0 0
      %416 = vmatpush1.bf16.msra.mxu0 %v399
      %417 = vmatprep.subr.bf16.mxu0 0
      %418 = vmatpush1.bf16.msra.mxu0 0
      %419 = vmatprep.subr.bf16.mxu0 0
      %420 = vmatpush1.bf16.msra.mxu0 0
      %421 = vmatprep.subr.bf16.mxu0 0
      %422 = vmatpush1.bf16.msra.mxu0 0
      %423 = vmatprep.subr.bf16.mxu0 0
      %424 = vmatpush1.bf16.msra.mxu0 0
      %425 = vmatprep.subr.bf16.mxu0 0
      %426 = vmatpush1.bf16.msra.mxu0 0
      %427 = vmatprep.subr.bf16.mxu0 0
      %428 = vmatpush1.bf16.msra.mxu0 0
      %429 = vmatprep.subr.bf16.mxu0 0
      %430 = vmatpush1.bf16.msra.mxu0 0
      %431 = vmatprep.subr.bf16.mxu0 0
      %432 = vmatpush1.bf16.msra.mxu0 0
      %433 = vmatprep.subr.bf16.mxu0 0
      %434 = vmatpush1.bf16.msra.mxu0 0
      %435 = vmatprep.subr.bf16.mxu0 0
      %436 = vmatpush1.bf16.msra.mxu0 0
      %437 = vmatprep.subr.bf16.mxu0 0
      %438 = vmatpush1.bf16.msra.mxu0 0
      %439 = vmatprep.subr.bf16.mxu0 0
      %440 = vmatpush1.bf16.msra.mxu0 0
      %441 = vmatprep.mubr.bf16.mxu0 0
      %442 = vmatmul.mubr.bf16.gmra.mrb[0].mxu0 %v404
      %v443 = vpop.f32.mrb[0].mxu0
      %v444 = vadd.f32 %v364, %v443
      %v445 = vpop.f32.mrb[0].mxu0
      %v446 = vpop.f32.mrb[0].mxu0
      %v447 = vadd.f32 %v367, %v446
      %v448 = vpop.f32.mrb[0].mxu0
      %449 = vmatprep.mubr.bf16.mxu0 0
      %450 = vmatmul.mubr.bf16.gmra.mrb[0].mxu0 %v407
      %v451 = vpop.f32.mrb[0].mxu0
      %v452 = vadd.f32 %v372, %v451
      %v453 = vpop.f32.mrb[0].mxu0
      %v454 = vpop.f32.mrb[0].mxu0
      %v455 = vpop.f32.mrb[0].mxu0
      %456 = vdwg.mxu0
      %v457 = vld [vmem:[%s246] sm:$0xe]
      %s458 = scalar_lea.vmem %s1, 64
      %v459 = vld [vmem:[%s458] sm:$0xf]
      %v460 = vld [vmem:[%s458 + $0x4] sm:$0xf]
      %v461 = vld [vmem:[%s458 + $0x8] sm:$0xf]
      %v462 = vld [vmem:[%s458 + $0xc] sm:$0xf]
      %v463 = vld [vmem:[%s458 + $0x10] sm:$0xf]
      %v464 = vld [vmem:[%s458 + $0x14] sm:$0xf]
      %v465 = vld [vmem:[%s458 + $0x18] sm:$0xf]
      %v466 = vld [vmem:[%s458 + $0x1c] sm:$0xf]
      %v468 = vunpack.c.l.b16 %v457
      %v469 = vpack.c.b16 %v278, %v468
      %vm470 = vcmask 1046528
      %v471 = vrot.slane %v469, 1
      %v472 = vrot.slane %v281, 1
      %v473 = vsel %vm470, %v471, %v472
      %v482 = vunpack.c.l.b16 %v459
      %v483 = vunpack.c.l.b16 %v460
      %v484 = vunpack.c.l.b16 %v461
      %v485 = vunpack.c.l.b16 %v462
      %v486 = vunpack.c.l.b16 %v463
      %v487 = vunpack.c.l.b16 %v464
      %v488 = vunpack.c.l.b16 %v465
      %v489 = vunpack.c.l.b16 %v466
      %v490 = vpack.c.b16 %v483, %v482
      %v491 = vpack.c.b16 %v485, %v484
      %v492 = vpack.c.b16 %v487, %v486
      %v493 = vpack.c.b16 %v489, %v488
      %v499 = vsel %vm322, %v473, 0
      %v502 = vsel %vm322, %v472, 0
      %504 = vmatprep.subr.bf16.mxu0 0
      %505 = vmatpush1.bf16.msra.mxu0 %v490
      %506 = vmatprep.subr.bf16.mxu0 0
      %507 = vmatpush1.bf16.msra.mxu0 %v491
      %508 = vmatprep.subr.bf16.mxu0 0
      %509 = vmatpush1.bf16.msra.mxu0 %v492
      %510 = vmatprep.subr.bf16.mxu0 0
      %511 = vmatpush1.bf16.msra.mxu0 %v493
      %512 = vmatprep.subr.bf16.mxu0 0
      %513 = vmatpush1.bf16.msra.mxu0 0
      %514 = vmatprep.subr.bf16.mxu0 0
      %515 = vmatpush1.bf16.msra.mxu0 0
      %516 = vmatprep.subr.bf16.mxu0 0
      %517 = vmatpush1.bf16.msra.mxu0 0
      %518 = vmatprep.subr.bf16.mxu0 0
      %519 = vmatpush1.bf16.msra.mxu0 0
      %520 = vmatprep.subr.bf16.mxu0 0
      %521 = vmatpush1.bf16.msra.mxu0 0
      %522 = vmatprep.subr.bf16.mxu0 0
      %523 = vmatpush1.bf16.msra.mxu0 0
      %524 = vmatprep.subr.bf16.mxu0 0
      %525 = vmatpush1.bf16.msra.mxu0 0
      %526 = vmatprep.subr.bf16.mxu0 0
      %527 = vmatpush1.bf16.msra.mxu0 0
      %528 = vmatprep.subr.bf16.mxu0 0
      %529 = vmatpush1.bf16.msra.mxu0 0
      %530 = vmatprep.subr.bf16.mxu0 0
      %531 = vmatpush1.bf16.msra.mxu0 0
      %532 = vmatprep.subr.bf16.mxu0 0
      %533 = vmatpush1.bf16.msra.mxu0 0
      %534 = vmatprep.subr.bf16.mxu0 0
      %535 = vmatpush1.bf16.msra.mxu0 0
      %536 = vmatprep.mubr.bf16.mxu0 0
      %537 = vmatmul.mubr.bf16.gmra.mrb[0].mxu0 %v499
      %v538 = vpop.f32.mrb[0].mxu0
      %v539 = vadd.f32 0.0, %v538
      %v540 = vpop.f32.mrb[0].mxu0
      %v541 = vpop.f32.mrb[0].mxu0
      %v542 = vadd.f32 0.0, %v541
      %v543 = vpop.f32.mrb[0].mxu0
      %544 = vmatprep.mubr.bf16.mxu0 0
      %545 = vmatmul.mubr.bf16.gmra.mrb[0].mxu0 %v502
      %v546 = vpop.f32.mrb[0].mxu0
      %v547 = vadd.f32 0.0, %v546
      %v548 = vpop.f32.mrb[0].mxu0
      %v549 = vpop.f32.mrb[0].mxu0
      %v550 = vpop.f32.mrb[0].mxu0
      %551 = vdwg.mxu0
      %v552 = vadd.f32 %v444, %v539
      %v553 = vadd.f32 %v447, %v542
      %v554 = vadd.f32 %v452, %v547
      %v555 = vld [vmem:[%s4] sm:$0x1]
      %v557 = vlaneseq
      %v558 = vshrl.u32 %v557, 7
      %v559 = vsub.s32 0, %v558
      %v560 = vrot.slane %v555, %v559
      %v562 = vadd.f32 %v552, %v560
      %v563 = vadd.f32 %v553, %v560
      %v564 = vadd.f32 %v554, %v560
      %v565 = vmax.f32 %v562, 0.0
      %v566 = vmax.f32 %v563, 0.0
      %v567 = vmax.f32 %v564, 0.0
      %v568 = vlaneseq
      %v569 = vshrl.u32 %v568, 7
      %v570 = vadd.s32 %v569, 8
      %v571 = vadd.s32 %v569, 16
      %vm572 = vcmp.ge.s32.totalorder %v569, 1
      %vm573 = vcmp.ge.s32.totalorder %v570, 1
      %vm574 = vcmp.ge.s32.totalorder %v571, 1
      %vm575 = vcmp.le.s32.totalorder %v569, 16
      %vm576 = vcmp.le.s32.totalorder %v570, 16
      %vm577 = vcmp.le.s32.totalorder %v571, 16
      %vm578 = vmand %vm572, %vm575
      %vm579 = vmand %vm573, %vm576
      %vm580 = vmand %vm574, %vm577
      %v581 = vsel %vm578, 1, 0
      %v582 = vsel %vm579, 1, 0
      %v583 = vsel %vm580, 1, 0
      %vm584 = vcmp.eq.s32.totalorder %v581, 1
      %vm585 = vcmp.eq.s32.totalorder %v582, 1
      %vm586 = vcmp.eq.s32.totalorder %v583, 1
      %v587 = vsel %vm584, %v565, 0.0
      %v588 = vsel %vm585, %v566, 0.0
      %v589 = vsel %vm586, %v567, 0.0
      %v590 = vpack.c.bf16 %v588, %v587
      %v591 = vpack.c.bf16 %v589, %v589
      %v594 = vunpack.c.l.b16 %v590
      %v595 = vunpack.c.h.b16 %v590
      %v596 = vunpack.c.l.b16 %v591
      %v597 = vpack.c.b16 %v594, %v594
      %v598 = vpack.c.b16 %v595, %v595
      %v599 = vpack.c.b16 %v596, %v596
      %vm603 = vcmask 519168
      %604 = vst.msk [vmem:[#allocation2] sm:$0xf] %vm603, %v597
      %605 = vst.msk [vmem:[#allocation2 + $0x4] sm:$0xf] %vm603, %v598
      %vm606 = vcmask 516096
      %607 = vst.msk [vmem:[#allocation2 + $0x8] sm:$0x1] %vm606, %v599
      %v608 = vld [vmem:[%s246] sm:$0xe]
      %v609 = vld [vmem:[%s246 + $0x4] sm:$0xf]
      %v610 = vld [vmem:[%s246 + $0x8] sm:$0x1]
      %v611 = vld [vmem:[%s3] sm:$0xf]
      %v612 = vld [vmem:[%s3 + $0x4] sm:$0xf]
      %v613 = vld [vmem:[%s3 + $0x8] sm:$0xf]
      %v614 = vld [vmem:[%s3 + $0xc] sm:$0xf]
      %v615 = vld [vmem:[%s3 + $0x10] sm:$0xf]
      %v616 = vld [vmem:[%s3 + $0x14] sm:$0xf]
      %v617 = vld [vmem:[%s3 + $0x18] sm:$0xf]
      %v618 = vld [vmem:[%s3 + $0x1c] sm:$0xf]
      %v619 = vld [vmem:[#allocation2] sm:$0xf]
      %v620 = vld [vmem:[#allocation2 + $0x4] sm:$0xf]
      %v621 = vld [vmem:[%s2] sm:$0xf]
      %v622 = vld [vmem:[%s2 + $0x4] sm:$0xf]
      %v623 = vld [vmem:[%s2 + $0x8] sm:$0xf]
      %v624 = vld [vmem:[%s2 + $0xc] sm:$0xf]
      %v625 = vld [vmem:[%s2 + $0x10] sm:$0xf]
      %v626 = vld [vmem:[%s2 + $0x14] sm:$0xf]
      %v627 = vld [vmem:[%s2 + $0x18] sm:$0xf]
      %v628 = vld [vmem:[%s2 + $0x1c] sm:$0xf]
      %v631 = vunpack.c.l.b16 %v619
      %v632 = vunpack.c.l.b16 %v620
      %v633 = vpack.c.b16 %v632, %v631
      %v642 = vunpack.c.l.b16 %v621
      %v643 = vunpack.c.l.b16 %v622
      %v644 = vunpack.c.l.b16 %v623
      %v645 = vunpack.c.l.b16 %v624
      %v646 = vunpack.c.l.b16 %v625
      %v647 = vunpack.c.l.b16 %v626
      %v648 = vunpack.c.l.b16 %v627
      %v649 = vunpack.c.l.b16 %v628
      %v650 = vpack.c.b16 %v643, %v642
      %v651 = vpack.c.b16 %v645, %v644
      %v652 = vpack.c.b16 %v647, %v646
      %v653 = vpack.c.b16 %v649, %v648
      %v659 = vsel %vm322, %v633, 0
      %661 = vmatprep.subr.bf16.mxu0 0
      %662 = vmatpush1.bf16.msra.mxu0 %v650
      %663 = vmatprep.subr.bf16.mxu0 0
      %664 = vmatpush1.bf16.msra.mxu0 %v651
      %665 = vmatprep.subr.bf16.mxu0 0
      %666 = vmatpush1.bf16.msra.mxu0 %v652
      %667 = vmatprep.subr.bf16.mxu0 0
      %668 = vmatpush1.bf16.msra.mxu0 %v653
      %669 = vmatprep.subr.bf16.mxu0 0
      %670 = vmatpush1.bf16.msra.mxu0 0
      %671 = vmatprep.subr.bf16.mxu0 0
      %672 = vmatpush1.bf16.msra.mxu0 0
      %673 = vmatprep.subr.bf16.mxu0 0
      %674 = vmatpush1.bf16.msra.mxu0 0
      %675 = vmatprep.subr.bf16.mxu0 0
      %676 = vmatpush1.bf16.msra.mxu0 0
      %677 = vmatprep.subr.bf16.mxu0 0
      %678 = vmatpush1.bf16.msra.mxu0 0
      %679 = vmatprep.subr.bf16.mxu0 0
      %680 = vmatpush1.bf16.msra.mxu0 0
      %681 = vmatprep.subr.bf16.mxu0 0
      %682 = vmatpush1.bf16.msra.mxu0 0
      %683 = vmatprep.subr.bf16.mxu0 0
      %684 = vmatpush1.bf16.msra.mxu0 0
      %685 = vmatprep.subr.bf16.mxu0 0
      %686 = vmatpush1.bf16.msra.mxu0 0
      %687 = vmatprep.subr.bf16.mxu0 0
      %688 = vmatpush1.bf16.msra.mxu0 0
      %689 = vmatprep.subr.bf16.mxu0 0
      %690 = vmatpush1.bf16.msra.mxu0 0
      %691 = vmatprep.subr.bf16.mxu0 0
      %692 = vmatpush1.bf16.msra.mxu0 0
      %693 = vmatprep.mubr.bf16.mxu0 0
      %694 = vmatmul.mubr.bf16.gmra.mrb[0].mxu0 %v659
      %v695 = vpop.f32.mrb[0].mxu0
      %v696 = vadd.f32 0.0, %v695
      %v697 = vpop.f32.mrb[0].mxu0
      %v698 = vpop.f32.mrb[0].mxu0
      %v699 = vadd.f32 0.0, %v698
      %v700 = vpop.f32.mrb[0].mxu0
      %701 = vdwg.mxu0
      %v705 = vunpack.c.l.b16 %v608
      %v706 = vunpack.c.l.b16 %v609
      %v707 = vunpack.c.l.b16 %v610
      %v708 = vpack.c.b16 %v706, %v705
      %v709 = vpack.c.b16 %v707, %v707
      %v710 = vrot.slane %v708, 1
      %v711 = vrot.slane %v709, 1
      %v712 = vsel %vm470, %v710, %v711
      %v721 = vunpack.c.l.b16 %v611
      %v722 = vunpack.c.l.b16 %v612
      %v723 = vunpack.c.l.b16 %v613
      %v724 = vunpack.c.l.b16 %v614
      %v725 = vunpack.c.l.b16 %v615
      %v726 = vunpack.c.l.b16 %v616
      %v727 = vunpack.c.l.b16 %v617
      %v728 = vunpack.c.l.b16 %v618
      %v729 = vpack.c.b16 %v722, %v721
      %v730 = vpack.c.b16 %v724, %v723
      %v731 = vpack.c.b16 %v726, %v725
      %v732 = vpack.c.b16 %v728, %v727
      %v738 = vsel %vm322, %v712, 0
      %740 = vmatprep.subr.bf16.mxu0 0
      %741 = vmatpush1.bf16.msra.mxu0 %v729
      %742 = vmatprep.subr.bf16.mxu0 0
      %743 = vmatpush1.bf16.msra.mxu0 %v730
      %744 = vmatprep.subr.bf16.mxu0 0
      %745 = vmatpush1.bf16.msra.mxu0 %v731
      %746 = vmatprep.subr.bf16.mxu0 0
      %747 = vmatpush1.bf16.msra.mxu0 %v732
      %748 = vmatprep.subr.bf16.mxu0 0
      %749 = vmatpush1.bf16.msra.mxu0 0
      %750 = vmatprep.subr.bf16.mxu0 0
      %751 = vmatpush1.bf16.msra.mxu0 0
      %752 = vmatprep.subr.bf16.mxu0 0
      %753 = vmatpush1.bf16.msra.mxu0 0
      %754 = vmatprep.subr.bf16.mxu0 0
      %755 = vmatpush1.bf16.msra.mxu0 0
      %756 = vmatprep.subr.bf16.mxu0 0
      %757 = vmatpush1.bf16.msra.mxu0 0
      %758 = vmatprep.subr.bf16.mxu0 0
      %759 = vmatpush1.bf16.msra.mxu0 0
      %760 = vmatprep.subr.bf16.mxu0 0
      %761 = vmatpush1.bf16.msra.mxu0 0
      %762 = vmatprep.subr.bf16.mxu0 0
      %763 = vmatpush1.bf16.msra.mxu0 0
      %764 = vmatprep.subr.bf16.mxu0 0
      %765 = vmatpush1.bf16.msra.mxu0 0
      %766 = vmatprep.subr.bf16.mxu0 0
      %767 = vmatpush1.bf16.msra.mxu0 0
      %768 = vmatprep.subr.bf16.mxu0 0
      %769 = vmatpush1.bf16.msra.mxu0 0
      %770 = vmatprep.subr.bf16.mxu0 0
      %771 = vmatpush1.bf16.msra.mxu0 0
      %772 = vmatprep.mubr.bf16.mxu0 0
      %773 = vmatmul.mubr.bf16.gmra.mrb[0].mxu0 %v738
      %v774 = vpop.f32.mrb[0].mxu0
      %v775 = vadd.f32 %v696, %v774
      %v776 = vpop.f32.mrb[0].mxu0
      %v777 = vpop.f32.mrb[0].mxu0
      %v778 = vadd.f32 %v699, %v777
      %v779 = vpop.f32.mrb[0].mxu0
      %780 = vdwg.mxu0
      %v781 = vld [vmem:[#allocation2] sm:$0xf]
      %v782 = vld [vmem:[#allocation2 + $0x4] sm:$0xf]
      %v783 = vld [vmem:[#allocation2 + $0x8] sm:$0x1]
      %s784 = scalar_lea.vmem %s2, 32
      %v785 = vld [vmem:[%s784] sm:$0xf]
      %v786 = vld [vmem:[%s784 + $0x4] sm:$0xf]
      %v787 = vld [vmem:[%s784 + $0x8] sm:$0xf]
      %v788 = vld [vmem:[%s784 + $0xc] sm:$0xf]
      %v789 = vld [vmem:[%s784 + $0x10] sm:$0xf]
      %v790 = vld [vmem:[%s784 + $0x14] sm:$0xf]
      %v791 = vld [vmem:[%s784 + $0x18] sm:$0xf]
      %v792 = vld [vmem:[%s784 + $0x1c] sm:$0xf]
      %v796 = vunpack.c.l.b16 %v781
      %v797 = vunpack.c.l.b16 %v782
      %v798 = vunpack.c.l.b16 %v783
      %v799 = vpack.c.b16 %v797, %v796
      %v800 = vpack.c.b16 %v798, %v798
      %v802 = vshrl.u32 %v799, 16
      %v804 = vshll.u32 %v799, 16
      %v806 = vrot.slane %v804, 1
      %v807 = vor.u32 %v802, %v806
      %v809 = vshll.u32 %v800, 16
      %v811 = vrot.slane %v809, 1
      %v812 = vsel %vm282, %v807, %v811
      %v821 = vunpack.c.l.b16 %v785
      %v822 = vunpack.c.l.b16 %v786
      %v823 = vunpack.c.l.b16 %v787
      %v824 = vunpack.c.l.b16 %v788
      %v825 = vunpack.c.l.b16 %v789
      %v826 = vunpack.c.l.b16 %v790
      %v827 = vunpack.c.l.b16 %v791
      %v828 = vunpack.c.l.b16 %v792
      %v829 = vpack.c.b16 %v822, %v821
      %v830 = vpack.c.b16 %v824, %v823
      %v831 = vpack.c.b16 %v826, %v825
      %v832 = vpack.c.b16 %v828, %v827
      %v838 = vsel %vm322, %v812, 0
      %840 = vmatprep.subr.bf16.mxu0 0
      %841 = vmatpush1.bf16.msra.mxu0 %v829
      %842 = vmatprep.subr.bf16.mxu0 0
      %843 = vmatpush1.bf16.msra.mxu0 %v830
      %844 = vmatprep.subr.bf16.mxu0 0
      %845 = vmatpush1.bf16.msra.mxu0 %v831
      %846 = vmatprep.subr.bf16.mxu0 0
      %847 = vmatpush1.bf16.msra.mxu0 %v832
      %848 = vmatprep.subr.bf16.mxu0 0
      %849 = vmatpush1.bf16.msra.mxu0 0
      %850 = vmatprep.subr.bf16.mxu0 0
      %851 = vmatpush1.bf16.msra.mxu0 0
      %852 = vmatprep.subr.bf16.mxu0 0
      %853 = vmatpush1.bf16.msra.mxu0 0
      %854 = vmatprep.subr.bf16.mxu0 0
      %855 = vmatpush1.bf16.msra.mxu0 0
      %856 = vmatprep.subr.bf16.mxu0 0
      %857 = vmatpush1.bf16.msra.mxu0 0
      %858 = vmatprep.subr.bf16.mxu0 0
      %859 = vmatpush1.bf16.msra.mxu0 0
      %860 = vmatprep.subr.bf16.mxu0 0
      %861 = vmatpush1.bf16.msra.mxu0 0
      %862 = vmatprep.subr.bf16.mxu0 0
      %863 = vmatpush1.bf16.msra.mxu0 0
      %864 = vmatprep.subr.bf16.mxu0 0
      %865 = vmatpush1.bf16.msra.mxu0 0
      %866 = vmatprep.subr.bf16.mxu0 0
      %867 = vmatpush1.bf16.msra.mxu0 0
      %868 = vmatprep.subr.bf16.mxu0 0
      %869 = vmatpush1.bf16.msra.mxu0 0
      %870 = vmatprep.subr.bf16.mxu0 0
      %871 = vmatpush1.bf16.msra.mxu0 0
      %872 = vmatprep.mubr.bf16.mxu0 0
      %873 = vmatmul.mubr.bf16.gmra.mrb[0].mxu0 %v838
      %v874 = vpop.f32.mrb[0].mxu0
      %v875 = vadd.f32 0.0, %v874
      %v876 = vpop.f32.mrb[0].mxu0
      %v877 = vpop.f32.mrb[0].mxu0
      %v878 = vadd.f32 0.0, %v877
      %v879 = vpop.f32.mrb[0].mxu0
      %880 = vdwg.mxu0
      %v881 = vadd.f32 %v775, %v875
      %v882 = vadd.f32 %v778, %v878
      %v883 = vld [vmem:[#allocation2] sm:$0xe]
      %s884 = scalar_lea.vmem %s2, 64
      %v885 = vld [vmem:[%s884] sm:$0xf]
      %v886 = vld [vmem:[%s884 + $0x4] sm:$0xf]
      %v887 = vld [vmem:[%s884 + $0x8] sm:$0xf]
      %v888 = vld [vmem:[%s884 + $0xc] sm:$0xf]
      %v889 = vld [vmem:[%s884 + $0x10] sm:$0xf]
      %v890 = vld [vmem:[%s884 + $0x14] sm:$0xf]
      %v891 = vld [vmem:[%s884 + $0x18] sm:$0xf]
      %v892 = vld [vmem:[%s884 + $0x1c] sm:$0xf]
      %v894 = vunpack.c.l.b16 %v883
      %v895 = vpack.c.b16 %v797, %v894
      %v896 = vrot.slane %v895, 1
      %v897 = vrot.slane %v800, 1
      %v898 = vsel %vm470, %v896, %v897
      %v907 = vunpack.c.l.b16 %v885
      %v908 = vunpack.c.l.b16 %v886
      %v909 = vunpack.c.l.b16 %v887
      %v910 = vunpack.c.l.b16 %v888
      %v911 = vunpack.c.l.b16 %v889
      %v912 = vunpack.c.l.b16 %v890
      %v913 = vunpack.c.l.b16 %v891
      %v914 = vunpack.c.l.b16 %v892
      %v915 = vpack.c.b16 %v908, %v907
      %v916 = vpack.c.b16 %v910, %v909
      %v917 = vpack.c.b16 %v912, %v911
      %v918 = vpack.c.b16 %v914, %v913
      %v924 = vsel %vm322, %v898, 0
      %926 = vmatprep.subr.bf16.mxu0 0
      %927 = vmatpush1.bf16.msra.mxu0 %v915
      %928 = vmatprep.subr.bf16.mxu0 0
      %929 = vmatpush1.bf16.msra.mxu0 %v916
      %930 = vmatprep.subr.bf16.mxu0 0
      %931 = vmatpush1.bf16.msra.mxu0 %v917
      %932 = vmatprep.subr.bf16.mxu0 0
      %933 = vmatpush1.bf16.msra.mxu0 %v918
      %934 = vmatprep.subr.bf16.mxu0 0
      %935 = vmatpush1.bf16.msra.mxu0 0
      %936 = vmatprep.subr.bf16.mxu0 0
      %937 = vmatpush1.bf16.msra.mxu0 0
      %938 = vmatprep.subr.bf16.mxu0 0
      %939 = vmatpush1.bf16.msra.mxu0 0
      %940 = vmatprep.subr.bf16.mxu0 0
      %941 = vmatpush1.bf16.msra.mxu0 0
      %942 = vmatprep.subr.bf16.mxu0 0
      %943 = vmatpush1.bf16.msra.mxu0 0
      %944 = vmatprep.subr.bf16.mxu0 0
      %945 = vmatpush1.bf16.msra.mxu0 0
      %946 = vmatprep.subr.bf16.mxu0 0
      %947 = vmatpush1.bf16.msra.mxu0 0
      %948 = vmatprep.subr.bf16.mxu0 0
      %949 = vmatpush1.bf16.msra.mxu0 0
      %950 = vmatprep.subr.bf16.mxu0 0
      %951 = vmatpush1.bf16.msra.mxu0 0
      %952 = vmatprep.subr.bf16.mxu0 0
      %953 = vmatpush1.bf16.msra.mxu0 0
      %954 = vmatprep.subr.bf16.mxu0 0
      %955 = vmatpush1.bf16.msra.mxu0 0
      %956 = vmatprep.subr.bf16.mxu0 0
      %957 = vmatpush1.bf16.msra.mxu0 0
      %958 = vmatprep.mubr.bf16.mxu0 0
      %959 = vmatmul.mubr.bf16.gmra.mrb[0].mxu0 %v924
      %v960 = vpop.f32.mrb[0].mxu0
      %v961 = vadd.f32 0.0, %v960
      %v962 = vpop.f32.mrb[0].mxu0
      %v963 = vpop.f32.mrb[0].mxu0
      %v964 = vadd.f32 0.0, %v963
      %v965 = vpop.f32.mrb[0].mxu0
      %966 = vdwg.mxu0
      %v967 = vadd.f32 %v881, %v961
      %v968 = vadd.f32 %v882, %v964
      %v969 = vld [vmem:[%s5] sm:$0x1]
      %v971 = vlaneseq
      %v972 = vshrl.u32 %v971, 7
      %v973 = vsub.s32 0, %v972
      %v974 = vrot.slane %v969, %v973
      %v976 = vadd.f32 %v967, %v974
      %v977 = vadd.f32 %v968, %v974
      %v978 = vmax.f32 %v976, 0.0
      %v979 = vmax.f32 %v977, 0.0
      %980 = vst [vmem:[%s251] sm:$0xff] %v978
      %981 = vst [vmem:[%s251 + $0x8] sm:$0xff] %v979
      %p982 = scmp.lt.s32.totalorder %s17, 1
      %s983 = scalar_select %p982, %s17, 1
      %s984 = smul.addr %s983, 2
      %s985 = smul.addr %s984, 8
      %s986 = scalar_lea.vmem %s6, %s985
      // Predicated region
      $region45: #{resnet_block_forward.1} parent=43 // pred_check
        %p987 = pneg %p166
      $region46: #{resnet_block_forward.1} parent=43 // pred_check_branch
        %989 = sbr.rel (%p987) target = $region48
      $region47: #{resnet_block_forward.1} parent=43 // pred_region
        _
      $region48: #{resnet_block_forward.1} parent=43 // pred_fallthru
        _
    $region44: #{resnet_block_forward.1} parent=5 // pred_fallthru
      _
    %p990 = scmp.le.s32.totalorder 2, %s12
    // Predicated region
    $region49: #{resnet_block_forward.1} parent=5 // pred_check
      %p991 = pneg %p990
    $region50: #{resnet_block_forward.1} parent=5 // pred_check_branch
      %993 = sbr.rel (%p991) target = $region52
    $region51: #{resnet_block_forward.1} parent=5 // pred_region
      %s994 = ssub.s32 %s12, 2
      // Predicated region
      $region53: #{resnet_block_forward.1} parent=51 // pred_check
        %p995 = pneg %p172
      $region54: #{resnet_block_forward.1} parent=51 // pred_check_branch
        %997 = sbr.rel (%p995) target = $region56
      $region55: #{resnet_block_forward.1} parent=51 // pred_region
        %p998 = scmp.lt.s32.totalorder %s18, 1
        %s999 = scalar_select %p998, %s18, 1
        %s1000 = smul.addr %s999, 2
        %s1001 = smul.addr %s1000, 8
        %s1002 = scalar_lea.vmem %s6, %s1001
      $region56: #{resnet_block_forward.1} parent=51 // pred_fallthru
        _
    $region52: #{resnet_block_forward.1} parent=5 // pred_fallthru
      _
  $region6: #{resnet_block_forward.1} parent=0 // loop_footer
    %s16 = sadd.s32 1, %s12
  $region7: #{resnet_block_forward.1} parent=0 // loop_footer_branch
    %11 = sbr.rel target = $region3
  $region8: #{resnet_block_forward.1} parent=0 // loop_exit
    _

</llo_original>
